<compile_context>
chip_gen: v7x
topology: tpu7x:2x2x1
jax: 0.10.0
libtpu: 0.0.40
codegen_flags: <defaults>
</compile_context>

<pallas_src>
import jax
import jax.numpy as jnp
from jax.experimental import pallas as pl
from jax.experimental.pallas import tpu as pltpu

NEG_SLOPE = 0.01  # nn.LeakyReLU default


def _leaky(t):
    return jnp.where(t >= 0, t, NEG_SLOPE * t)


# ----------------------------------------------------------------- stage 1 --
def encode_kernel(x_ref, w1_ref, b1_ref, w2_ref, h_ref, z_ref):
    x = x_ref[...]
    h = jnp.dot(x, w1_ref[...], preferred_element_type=jnp.float32) + b1_ref[...]
    h = _leaky(h)                                                  # node_encoder
    z = jnp.dot(h, w2_ref[...], preferred_element_type=jnp.float32)
    h_ref[...] = h
    z_ref[...] = z


# ----------------------------------------------------------------- stage 2 --
def _make_edge_rank_kernel(row_tile, n, latent, cb, jb):
    """Per-row-tile kernel: masked sigmoid edge ranks -> degree gate -> output."""
    n_cb, n_jb = n // cb, n // jb

    def kernel(z_ref, b2_ref, adj_ref, dw_ref, db_ref, out_ref, er_ref):
        i = pl.program_id(0)
        row0 = pl.multiple_of(i * row_tile, row_tile)

        # Row tile of z sliced from the VMEM-resident full z; bias hoisted:
        #   (z_i + b2) - z_j  ==  (z_i - z_j) + b2
        zb = z_ref[pl.ds(row0, row_tile), :] + b2_ref[...]         # (tr, L)

        # ones operands for the MXU row-reductions (hoisted out of the loops).
        ones_l = jnp.ones((row_tile, 1, latent), jnp.float32)
        ones_n = jnp.ones((row_tile, 1, n), jnp.bfloat16)
        ones_deg = jnp.ones((n, 1), jnp.float32)

        # --- pass 1: er for all columns of this row tile, one column block at
        # a time, accumulated into the (tr, n) VMEM scratch. -------------------
        for c in range(n_cb):
            c0 = c * cb
            zc = z_ref[c0:c0 + cb, :]                              # (cb, L)
            diff = _leaky(zb[:, None, :] - zc[None, :, :])         # (tr, cb, L)
            # edge_encoder sum over L as a ones-vector matmul on the MXU.
            s = jnp.einsum("rml,rcl->rmc", ones_l, diff,
                           preferred_element_type=jnp.float32)[:, 0, :]
            a_blk = adj_ref[:, c0:c0 + cb]
            er_ref[:, c0:c0 + cb] = jnp.where(a_blk != 0.0,
                                              jax.nn.sigmoid(s), 0.0)

        er = er_ref[...]                                           # (tr, n)

        # degree_decoder: k = LeakyReLU(a * deg + c); row sum on the MXU too.
        deg = jnp.dot(er, ones_deg, preferred_element_type=jnp.float32)
        k = _leaky(dw_ref[0] * deg + db_ref[0])                    # (tr, 1)

        # --- pass 2: stable descending-sort rank + gate, one j block at a
        # time ((tr, jb, n) live, never (tr, n, n)). ---------------------------
        for b in range(n_jb):
            j0 = b * jb
            er_j = er[:, j0:j0 + jb]                               # (tr, jb)
            # 2-D "earlier column" tie mask (replaces two 3-D int32 iotas).
            col_j = jax.lax.broadcasted_iota(jnp.int32, (jb, n), 0) + j0
            col_o = jax.lax.broadcasted_iota(jnp.int32, (jb, n), 1)
            earlier = (col_o < col_j)[None, :, :]                  # (1, jb, n)
            a_v = er_j[:, :, None]                                 # value at col j
            b_v = er[:, None, :]                                   # value at col j'
            # rank = #(strictly greater) + #(equal with earlier column index)
            #      == position under a stable descending sort.
            cnt = ((b_v > a_v) | ((b_v == a_v) & earlier)).astype(jnp.bfloat16)
            rank = jnp.einsum("rmn,rjn->rmj", ones_n, cnt,
                              preferred_element_type=jnp.float32)[:, 0, :]
            # first_k gate (w == 1):  1 - 0.5*(1 + tanh(rank - k)) + 1
            gate = 2.0 - 0.5 * (1.0 + jnp.tanh(rank - k))
            out_ref[:, j0:j0 + jb] = er_j * gate

    return kernel


# --------------------------------------------------------------- tile picks --
def _pick_row_tile(n, target):
    """Largest multiple-of-8 divisor of n that is <= target and keeps the grid
    at >= 2 steps (v7x has two TensorCores; a 1-step grid idles one of them)."""
    cands = [t for t in range(8, n, 8) if n % t == 0 and t <= target]
    return max(cands) if cands else n


def _pick_col_block(n, target):
    """Inner column block: full width when small, else the largest
    multiple-of-128 divisor <= target (keeps static lane slices aligned)."""
    if n <= target:
        return n
    cands = [b for b in range(128, target + 1, 128) if n % b == 0]
    return max(cands) if cands else n


# ------------------------------------------------------------------ wrapper --
def dgg_forward(x, adj, w1, b1, w2, b2, deg_w, deg_b, *,
                row_tile=None, encode_tile=None, col_block=None,
                vmem_limit_bytes=64 * 1024 * 1024):
    n, in_dim = x.shape
    latent = w1.shape[1]

    # Stage-1 rows are cheap (only x/h/z tiles) -> bigger tile for MXU fill.
    # Stage-2 rows carry O(tr * block * max(L, N)) intermediates -> modest tile;
    # shrink row_tile / col_block further for v7x's 64 MiB VMEM.
    enc_tile = encode_tile or _pick_row_tile(n, 256)
    row_tile = row_tile or _pick_row_tile(n, 64)
    cb = col_block or _pick_col_block(n, 512)
    assert n % enc_tile == 0 and n % row_tile == 0 and n % cb == 0

    cparams = pltpu.CompilerParams(
        dimension_semantics=("parallel",),
        vmem_limit_bytes=vmem_limit_bytes)

    # --- stage 1: fused node / edge projections ------------------------------
    h, z = pl.pallas_call(
        encode_kernel,
        out_shape=(jax.ShapeDtypeStruct((n, latent), jnp.float32),
                   jax.ShapeDtypeStruct((n, latent), jnp.float32)),
        grid_spec=pltpu.PrefetchScalarGridSpec(
            num_scalar_prefetch=0,
            grid=(n // enc_tile,),
            in_specs=[
                pl.BlockSpec((enc_tile, in_dim), lambda i: (i, 0)),   # x tile
                pl.BlockSpec((in_dim, latent), lambda i: (0, 0)),     # W1
                pl.BlockSpec((1, latent), lambda i: (0, 0)),          # b1
                pl.BlockSpec((latent, latent), lambda i: (0, 0)),     # W2
            ],
            out_specs=[
                pl.BlockSpec((enc_tile, latent), lambda i: (i, 0)),   # h
                pl.BlockSpec((enc_tile, latent), lambda i: (i, 0)),   # z
            ],
        ),
        compiler_params=cparams,
    )(x, w1, b1, w2)

    # --- stage 2: masked edge ranks + degree gate -----------------------------
    kernel = _make_edge_rank_kernel(row_tile, n, latent, cb, cb)
    out_adj = pl.pallas_call(
        kernel,
        out_shape=jax.ShapeDtypeStruct((n, n), jnp.float32),
        grid_spec=pltpu.PrefetchScalarGridSpec(
            num_scalar_prefetch=0,
            grid=(n // row_tile,),
            in_specs=[
                pl.BlockSpec((n, latent), lambda i: (0, 0)),          # z (resident)
                pl.BlockSpec((1, latent), lambda i: (0, 0)),          # b2
                pl.BlockSpec((row_tile, n), lambda i: (i, 0)),        # adj tile
                pl.BlockSpec(memory_space=pltpu.MemorySpace.SMEM),    # deg_w
                pl.BlockSpec(memory_space=pltpu.MemorySpace.SMEM),    # deg_b
            ],
            out_specs=pl.BlockSpec((row_tile, n), lambda i: (i, 0)),
            scratch_shapes=[pltpu.VMEM((row_tile, n), jnp.float32)],  # er rows
        ),
        compiler_params=cparams,
    )(z, b2, adj, deg_w, deg_b)

    # TODO(synk): the PyTorch module returns out_adj.to_sparse(); sparse COO
    # tensors have no Pallas equivalent, so the dense adjacency is returned.
    return out_adj, h


# ----------------------------------------------------------------- reference --
def dgg_ref(x, adj, w1, b1, w2, b2, deg_w, deg_b):
    """Pure-JAX reference mirroring the PyTorch forward (dense adjacency)."""
    n = x.shape[0]
    h = _leaky(x @ w1 + b1)
    z = h @ w2
    s = jnp.sum(_leaky(z[:, None, :] - z[None, :, :] + b2), axis=-1)
    er = jnp.where(adj != 0.0, jax.nn.sigmoid(s), 0.0)
    k = _leaky(deg_w[0] * er.sum(-1, keepdims=True) + deg_b[0])
    order = jnp.argsort(-er, axis=-1, stable=True)            # descending, stable
    srt = jnp.take_along_axis(er, order, axis=-1)
    t = jnp.arange(n, dtype=jnp.float32)[None, :]
    first_k = 1.0 - 0.5 * (1.0 + jnp.tanh((t - k) / 1.0)) + 1.0
    fkr = srt * first_k
    out = jnp.zeros_like(er).at[jnp.arange(n)[:, None], order].set(fkr)
    return out, h


if __name__ == "__main__":
    # args.extra_edge_dim == 0 (required for the reference forward to typecheck)
    N, IN_DIM, LATENT = 16, 32, 64

    key = jax.random.PRNGKey(0)
    kx, ka, k1, k2, k3, k4 = jax.random.split(key, 6)

    x = jax.random.normal(kx, (N, IN_DIM), dtype=jnp.float32)
    # random binary adjacency with self loops (dense 0/1 stand-in for sparse adj)
    adj = (jax.random.uniform(ka, (N, N)) < 0.35).astype(jnp.float32)
    adj = jnp.maximum(adj, jnp.eye(N, dtype=jnp.float32))

    w1 = 0.3 * jax.random.normal(k1, (IN_DIM, LATENT), dtype=jnp.float32)
    b1 = 0.1 * jax.random.normal(k2, (1, LATENT), dtype=jnp.float32)
    w2 = 0.3 * jax.random.normal(k3, (LATENT, LATENT), dtype=jnp.float32)
    b2 = 0.1 * jax.random.normal(k4, (1, LATENT), dtype=jnp.float32)
    deg_w = jnp.array([0.7], dtype=jnp.float32)   # degree_decoder Linear(1, 1)
    deg_b = jnp.array([0.2], dtype=jnp.float32)

    out_adj, h = dgg_forward(x, adj, w1, b1, w2, b2, deg_w, deg_b)
    out_adj, h = jax.block_until_ready((out_adj, h))

    ref_adj, ref_h = dgg_ref(x, adj, w1, b1, w2, b2, deg_w, deg_b)
    assert out_adj.shape == (N, N) and h.shape == (N, LATENT)
    assert jnp.allclose(h, ref_h, rtol=1e-5, atol=1e-5), "node features mismatch"
    assert jnp.allclose(out_adj, ref_adj, rtol=1e-4, atol=1e-5), "out_adj mismatch"

    print("KERNEL_OK")
</pallas_src>

<mosaic_0001>
module attributes {stable_mosaic.version = 11 : i64} {
  func.func @encode_kernel(%arg0: i32, %arg1: memref<8x32xf32, #tpu.memory_space<vmem>>, %arg2: memref<32x64xf32, #tpu.memory_space<vmem>>, %arg3: memref<1x64xf32, #tpu.memory_space<vmem>>, %arg4: memref<64x64xf32, #tpu.memory_space<vmem>>, %arg5: memref<8x64xf32, #tpu.memory_space<vmem>>, %arg6: memref<8x64xf32, #tpu.memory_space<vmem>>) attributes {dimension_semantics = [#tpu.dimension_semantics<parallel>], iteration_bounds = array<i64: 2>, scalar_prefetch = 0 : i64, scratch_operands = 0 : i64, tpu.core_type = #tpu.core_type<tc>, window_params = [{transform_indices = @transform_0, window_bounds = array<i64: 8, 32>}, {pipeline_mode = #tpu.pipeline_mode<synchronous>, transform_indices = @transform_1, window_bounds = array<i64: 32, 64>}, {pipeline_mode = #tpu.pipeline_mode<synchronous>, transform_indices = @transform_2, window_bounds = array<i64: 1, 64>}, {pipeline_mode = #tpu.pipeline_mode<synchronous>, transform_indices = @transform_3, window_bounds = array<i64: 64, 64>}, {transform_indices = @transform_4, window_bounds = array<i64: 8, 64>}, {transform_indices = @transform_5, window_bounds = array<i64: 8, 64>}]} {
    %c0 = arith.constant 0 : index
    %c0_0 = arith.constant 0 : index
    %0 = vector.load %arg1[%c0, %c0_0] : memref<8x32xf32, #tpu.memory_space<vmem>>, vector<8x32xf32>
    %c0_1 = arith.constant 0 : index
    %c0_2 = arith.constant 0 : index
    %1 = vector.load %arg2[%c0_1, %c0_2] : memref<32x64xf32, #tpu.memory_space<vmem>>, vector<32x64xf32>
    %cst = arith.constant dense<0.000000e+00> : vector<8x64xf32>
    %2 = tpu.matmul %0, %1, %cst {dimension_numbers = #tpu.dot_dimension_numbers<[1], [0], [0], [1], [0, 0, 1, 1], [], []>} : vector<8x32xf32>, vector<32x64xf32>, vector<8x64xf32> -> vector<8x64xf32>
    %c0_3 = arith.constant 0 : index
    %c0_4 = arith.constant 0 : index
    %3 = vector.load %arg3[%c0_3, %c0_4] : memref<1x64xf32, #tpu.memory_space<vmem>>, vector<1x64xf32>
    %4 = vector.broadcast %3 : vector<1x64xf32> to vector<8x64xf32>
    %5 = arith.addf %2, %4 : vector<8x64xf32>
    %cst_5 = arith.constant 0.000000e+00 : f32
    %6 = vector.broadcast %cst_5 : f32 to vector<8x64xf32>
    %7 = arith.cmpf oge, %5, %6 : vector<8x64xf32>
    %cst_6 = arith.constant 0.00999999977 : f32
    %8 = vector.broadcast %cst_6 : f32 to vector<8x64xf32>
    %9 = arith.mulf %8, %5 : vector<8x64xf32>
    %10 = arith.select %7, %5, %9 : vector<8x64xi1>, vector<8x64xf32>
    %c0_7 = arith.constant 0 : index
    %c0_8 = arith.constant 0 : index
    %11 = vector.load %arg4[%c0_7, %c0_8] : memref<64x64xf32, #tpu.memory_space<vmem>>, vector<64x64xf32>
    %cst_9 = arith.constant dense<0.000000e+00> : vector<8x64xf32>
    %12 = tpu.matmul %10, %11, %cst_9 {dimension_numbers = #tpu.dot_dimension_numbers<[1], [0], [0], [1], [0, 0, 1, 1], [], []>} : vector<8x64xf32>, vector<64x64xf32>, vector<8x64xf32> -> vector<8x64xf32>
    %c0_10 = arith.constant 0 : index
    %c0_11 = arith.constant 0 : index
    %13 = vector.load %arg5[%c0_10, %c0_11] : memref<8x64xf32, #tpu.memory_space<vmem>>, vector<8x64xf32>
    tpu.vector_store %arg5[%c0_10, %c0_11], %10 {strides = array<i32>} : memref<8x64xf32, #tpu.memory_space<vmem>>, vector<8x64xf32>,
    %c0_12 = arith.constant 0 : index
    %c0_13 = arith.constant 0 : index
    %14 = vector.load %arg6[%c0_12, %c0_13] : memref<8x64xf32, #tpu.memory_space<vmem>>, vector<8x64xf32>
    tpu.vector_store %arg6[%c0_12, %c0_13], %12 {strides = array<i32>} : memref<8x64xf32, #tpu.memory_space<vmem>>, vector<8x64xf32>,
    return
  }
  func.func @transform_0(%arg0: i32) -> (i32, i32) {
    %c0_i32 = arith.constant 0 : i32
    %c0_i32_0 = arith.constant 0 : i32
    return %arg0, %c0_i32 : i32, i32
  }
  func.func @transform_1(%arg0: i32) -> (i32, i32) {
    %c0_i32 = arith.constant 0 : i32
    %c0_i32_0 = arith.constant 0 : i32
    %c0_i32_1 = arith.constant 0 : i32
    return %c0_i32, %c0_i32_0 : i32, i32
  }
  func.func @transform_2(%arg0: i32) -> (i32, i32) {
    %c0_i32 = arith.constant 0 : i32
    %c0_i32_0 = arith.constant 0 : i32
    %c0_i32_1 = arith.constant 0 : i32
    return %c0_i32, %c0_i32_0 : i32, i32
  }
  func.func @transform_3(%arg0: i32) -> (i32, i32) {
    %c0_i32 = arith.constant 0 : i32
    %c0_i32_0 = arith.constant 0 : i32
    %c0_i32_1 = arith.constant 0 : i32
    return %c0_i32, %c0_i32_0 : i32, i32
  }
  func.func @transform_4(%arg0: i32) -> (i32, i32) {
    %c0_i32 = arith.constant 0 : i32
    %c0_i32_0 = arith.constant 0 : i32
    return %arg0, %c0_i32 : i32, i32
  }
  func.func @transform_5(%arg0: i32) -> (i32, i32) {
    %c0_i32 = arith.constant 0 : i32
    %c0_i32_0 = arith.constant 0 : i32
    return %arg0, %c0_i32 : i32, i32
  }
}

</mosaic_0001>

<llo_original>
// kernel: tpu_custom_call.1
$region0: #{tpu_custom_call.1}
  #allocation0 [shape = 'u32[]', space=smem, size = 0x4, offset = 0x4, fixed_abs, tag = 'smem constant byte address 0x4 - core index']
  #allocation1 [shape = 'u32[144,128]{1,0:T(1,128)}', space=vmem, size = 0x12000, scoped, tag = 'internal scratch']
  %s0 = inlined_call_operand.hbm [shape: f32[16,32], index: 0, kind: input, shape index: {}]
  %s1 = inlined_call_operand.hbm [shape: f32[32,64], index: 1, kind: input, shape index: {}]
  %s2 = inlined_call_operand.hbm [shape: f32[1,64], index: 2, kind: input, shape index: {}]
  %s3 = inlined_call_operand.hbm [shape: f32[64,64], index: 3, kind: input, shape index: {}]
  %s4 = inlined_call_operand.hbm [shape: f32[16,64], index: 4, kind: output, shape index: {0}]
  %s5 = inlined_call_operand.hbm [shape: f32[16,64], index: 5, kind: output, shape index: {1}]
  %6 = xla_tuple %s4, %s5
  %s7 = sld [smem:[#allocation0]]
  $region73: #{tpu_custom_call.1} parent=0
    _
  %s9 = ssub.s32 1, %s7
  %s10 = scalar_select 0, %s9, %s7
  $region1: #{tpu_custom_call.1} parent=0
    #allocation2 [shape = 'u8[8192]{0}', space=vmem, size = 0x2000, scoped, tag = 'input window, operand 0']
    #allocation3 [shape = 's32[2]{0}', space=sflag, size = 0x8, scoped, tag = 'scoped memory for tpu_custom_call.1']
    #allocation4 [shape = 's32[2]{0}', space=sflag, size = 0x8, scoped, tag = 'scoped memory for tpu_custom_call.1']
    #allocation5 [shape = 'u8[16384]{0}', space=vmem, size = 0x4000, scoped, tag = 'input window, operand 1, single buffered']
    #allocation6 [shape = 's32[1]{0}', space=sflag, size = 0x4, scoped, tag = 'scoped memory for tpu_custom_call.1']
    #allocation7 [shape = 'u8[512]{0}', space=vmem, size = 0x400, scoped, tag = 'input window, operand 2, single buffered']
    #allocation8 [shape = 'u8[32768]{0}', space=vmem, size = 0x8000, scoped, tag = 'input window, operand 3, single buffered']
    #allocation9 [shape = 's32[1]{0}', space=sflag, size = 0x4, scoped, tag = 'scoped memory for tpu_custom_call.1']
    #allocation10 [shape = 'u8[8192]{0}', space=vmem, size = 0x2000, scoped, tag = 'output window, operand 0']
    #allocation11 [shape = 'u8[8192]{0}', space=vmem, size = 0x2000, scoped, tag = 'output window, operand 1']
    #allocation12 [shape = 's32[2]{0}', space=sflag, size = 0x8, scoped, tag = 'scoped memory for tpu_custom_call.1']
    %11 = vsyncpa [#allocation3], 0
    %s12 = scalar_lea.sflag [#allocation3], 1
    %13 = vsyncpa %s12, 0
    %14 = vsyncpa [#allocation6], 0
    %15 = vsyncpa [#allocation9], 0
    %16 = vsyncpa [#allocation4], 0
    %s17 = scalar_lea.sflag [#allocation4], 1
    %18 = vsyncpa %s17, 0
    %19 = vsyncpa [#allocation12], 0
    %s20 = scalar_lea.sflag [#allocation12], 1
    %21 = vsyncpa %s20, 0
    loop: start=0, step=1, limit=4
    $region2: #{tpu_custom_call.1} parent=1 // loop_pre_header
      _
    $region3: #{tpu_custom_call.1} parent=1 // loop_header
      %s23 = sphi 0, %s27
      %p24 = scmp.ge.s32.totalorder %s23, 4
      %s33 = sphi 0, %s35
      %s36 = sphi 0, %s33
      %s37 = sphi 0, %s36
      %s53 = sphi 0, %s37
      %s57 = sphi 0, %s57
      %s59 = sphi 0, %s57
      %s60 = sphi 0, %s59
      %s74 = sphi 0, %s60
      %s78 = sphi 0, %s78
      %s80 = sphi 0, %s78
      %s81 = sphi 0, %s80
      %s95 = sphi 0, %s81
      %s99 = sphi 0, %s99
      %s101 = sphi 0, %s99
      %s102 = sphi 0, %s101
      %s116 = sphi 0, %s102
      %s122 = sphi 0, %s124
      %s125 = sphi 0, %s122
      %s126 = sphi 0, %s125
      %s142 = sphi 0, %s126
      %s148 = sphi 0, %s150
      %s151 = sphi 0, %s148
      %s152 = sphi 0, %s151
      %s168 = sphi 0, %s152
    $region4: #{tpu_custom_call.1} parent=1 // loop_header_branch
      %26 = sbr.rel (%p24) target = $region8
    $region5: #{tpu_custom_call.1} parent=1 // loop_body
      %s28 = ssub.s32 %s23, 1
      %s29 = ssub.s32 %s23, 2
      %s30 = sadd.s32 %s23, 1
      %s31 = ssub.s32 %s23, %s30
      %p32 = scmp.eq.s32.totalorder %s31, 0
      %s34 = sadd.s32 %s33, 1
      %s35 = scalar_select %p32, %s33, %s34
      %p38 = pneg %p32
      %p39 = scmp.eq.s32.totalorder %s23, 1
      %p40 = por %p38, %p39
      %p41 = scmp.ne.s32.totalorder %s33, %s36
      %p42 = scmp.eq.s32.totalorder %s23, 0
      %p43 = por %p41, %p42
      %p44 = scmp.ne.s32.totalorder %s33, %s36
      %p45 = scmp.eq.s32.totalorder %s28, 1
      %p46 = por %p44, %p45
      %p47 = scmp.ne.s32.totalorder %s36, %s37
      %p48 = scmp.eq.s32.totalorder %s28, 0
      %p49 = por %p47, %p48
      %p50 = scmp.ne.s32.totalorder %s36, %s37
      %p51 = scmp.eq.s32.totalorder %s29, 1
      %p52 = por %p50, %p51
      %p54 = scmp.ne.s32.totalorder %s37, %s53
      %p55 = scmp.eq.s32.totalorder %s29, 0
      %p56 = por %p54, %p55
      %s58 = sadd.s32 %s57, 1
      %p61 = scmp.eq.s32.totalorder %s23, 1
      %p62 = scmp.ne.s32.totalorder %s57, %s59
      %p63 = scmp.eq.s32.totalorder %s23, 0
      %p64 = por %p62, %p63
      %p65 = scmp.ne.s32.totalorder %s57, %s59
      %p66 = scmp.eq.s32.totalorder %s28, 1
      %p67 = por %p65, %p66
      %p68 = scmp.ne.s32.totalorder %s59, %s60
      %p69 = scmp.eq.s32.totalorder %s28, 0
      %p70 = por %p68, %p69
      %p71 = scmp.ne.s32.totalorder %s59, %s60
      %p72 = scmp.eq.s32.totalorder %s29, 1
      %p73 = por %p71, %p72
      %p75 = scmp.ne.s32.totalorder %s60, %s74
      %p76 = scmp.eq.s32.totalorder %s29, 0
      %p77 = por %p75, %p76
      %s79 = sadd.s32 %s78, 1
      %p82 = scmp.eq.s32.totalorder %s23, 1
      %p83 = scmp.ne.s32.totalorder %s78, %s80
      %p84 = scmp.eq.s32.totalorder %s23, 0
      %p85 = por %p83, %p84
      %p86 = scmp.ne.s32.totalorder %s78, %s80
      %p87 = scmp.eq.s32.totalorder %s28, 1
      %p88 = por %p86, %p87
      %p89 = scmp.ne.s32.totalorder %s80, %s81
      %p90 = scmp.eq.s32.totalorder %s28, 0
      %p91 = por %p89, %p90
      %p92 = scmp.ne.s32.totalorder %s80, %s81
      %p93 = scmp.eq.s32.totalorder %s29, 1
      %p94 = por %p92, %p93
      %p96 = scmp.ne.s32.totalorder %s81, %s95
      %p97 = scmp.eq.s32.totalorder %s29, 0
      %p98 = por %p96, %p97
      %s100 = sadd.s32 %s99, 1
      %p103 = scmp.eq.s32.totalorder %s23, 1
      %p104 = scmp.ne.s32.totalorder %s99, %s101
      %p105 = scmp.eq.s32.totalorder %s23, 0
      %p106 = por %p104, %p105
      %p107 = scmp.ne.s32.totalorder %s99, %s101
      %p108 = scmp.eq.s32.totalorder %s28, 1
      %p109 = por %p107, %p108
      %p110 = scmp.ne.s32.totalorder %s101, %s102
      %p111 = scmp.eq.s32.totalorder %s28, 0
      %p112 = por %p110, %p111
      %p113 = scmp.ne.s32.totalorder %s101, %s102
      %p114 = scmp.eq.s32.totalorder %s29, 1
      %p115 = por %p113, %p114
      %p117 = scmp.ne.s32.totalorder %s102, %s116
      %p118 = scmp.eq.s32.totalorder %s29, 0
      %p119 = por %p117, %p118
      %s120 = ssub.s32 %s23, %s30
      %p121 = scmp.eq.s32.totalorder %s120, 0
      %s123 = sadd.s32 %s122, 1
      %s124 = scalar_select %p121, %s122, %s123
      %p127 = pneg %p121
      %p128 = scmp.eq.s32.totalorder %s23, 1
      %p129 = por %p127, %p128
      %p130 = scmp.ne.s32.totalorder %s122, %s125
      %p131 = scmp.eq.s32.totalorder %s23, 0
      %p132 = por %p130, %p131
      %p133 = scmp.ne.s32.totalorder %s122, %s125
      %p134 = scmp.eq.s32.totalorder %s28, 1
      %p135 = por %p133, %p134
      %p136 = scmp.ne.s32.totalorder %s125, %s126
      %p137 = scmp.eq.s32.totalorder %s28, 0
      %p138 = por %p136, %p137
      %p139 = scmp.ne.s32.totalorder %s125, %s126
      %p140 = scmp.eq.s32.totalorder %s29, 1
      %p141 = por %p139, %p140
      %p143 = scmp.ne.s32.totalorder %s126, %s142
      %p144 = scmp.eq.s32.totalorder %s29, 0
      %p145 = por %p143, %p144
      %s146 = ssub.s32 %s23, %s30
      %p147 = scmp.eq.s32.totalorder %s146, 0
      %s149 = sadd.s32 %s148, 1
      %s150 = scalar_select %p147, %s148, %s149
      %p153 = pneg %p147
      %p154 = scmp.eq.s32.totalorder %s23, 1
      %p155 = por %p153, %p154
      %p156 = scmp.ne.s32.totalorder %s148, %s151
      %p157 = scmp.eq.s32.totalorder %s23, 0
      %p158 = por %p156, %p157
      %p159 = scmp.ne.s32.totalorder %s148, %s151
      %p160 = scmp.eq.s32.totalorder %s28, 1
      %p161 = por %p159, %p160
      %p162 = scmp.ne.s32.totalorder %s151, %s152
      %p163 = scmp.eq.s32.totalorder %s28, 0
      %p164 = por %p162, %p163
      %p165 = scmp.ne.s32.totalorder %s151, %s152
      %p166 = scmp.eq.s32.totalorder %s29, 1
      %p167 = por %p165, %p166
      %p169 = scmp.ne.s32.totalorder %s152, %s168
      %p170 = scmp.eq.s32.totalorder %s29, 0
      %p171 = por %p169, %p170
      %p172 = scmp.le.s32.totalorder 1, %s23
      %p173 = scmp.lt.s32.totalorder %s23, 3
      %p174 = pnand %p172, %p173
      %p175 = pneg %p174
      // Predicated region
      $region9: #{tpu_custom_call.1} parent=5 // pred_check
        _
      $region10: #{tpu_custom_call.1} parent=5 // pred_check_branch
        %177 = sbr.rel (%p174) target = $region12
      $region11: #{tpu_custom_call.1} parent=5 // pred_region
        %s178 = ssub.s32 %s23, 1
        // Predicated region
        $region13: #{tpu_custom_call.1} parent=11 // pred_check
          %p179 = pneg %p70
        $region14: #{tpu_custom_call.1} parent=11 // pred_check_branch
          %181 = sbr.rel (%p179) target = $region16
        $region15: #{tpu_custom_call.1} parent=11 // pred_region
          %s183 = ssub.s32 512, 512
          %184 = vsyncadd [#allocation6], %s183
          %s185 = sshll.u32 [#allocation5], 4
          %s186 = int_to_ptr.vmem [resolvable:$true] %s185
          %191 = dma.hbm_to_vmem [thread:$0]  %s1, 512, %s186, [#allocation6], 128, 128, 8
        $region16: #{tpu_custom_call.1} parent=11 // pred_fallthru
          _
        // Predicated region
        $region17: #{tpu_custom_call.1} parent=11 // pred_check
          %p192 = pneg %p91
        $region18: #{tpu_custom_call.1} parent=11 // pred_check_branch
          %194 = sbr.rel (%p192) target = $region20
        $region19: #{tpu_custom_call.1} parent=11 // pred_region
          %s196 = ssub.s32 16, 16
          %197 = vsyncadd [#allocation6], %s196
          %s199 = sshll.u32 [#allocation7], 4
          %s200 = int_to_ptr.vmem [resolvable:$true] %s199
          %202 = dma.hbm_to_vmem [thread:$0]  %s2, 16, %s200, [#allocation6]
        $region20: #{tpu_custom_call.1} parent=11 // pred_fallthru
          _
        // Predicated region
        $region21: #{tpu_custom_call.1} parent=11 // pred_check
          %p203 = pneg %p112
        $region22: #{tpu_custom_call.1} parent=11 // pred_check_branch
          %205 = sbr.rel (%p203) target = $region24
        $region23: #{tpu_custom_call.1} parent=11 // pred_region
          %s207 = ssub.s32 1024, 1024
          %208 = vsyncadd [#allocation9], %s207
          %s209 = sshll.u32 [#allocation8], 4
          %s210 = int_to_ptr.vmem [resolvable:$true] %s209
          %215 = dma.hbm_to_vmem [thread:$0]  %s3, 1024, %s210, [#allocation9], 128, 128, 8
        $region24: #{tpu_custom_call.1} parent=11 // pred_fallthru
          _
      $region12: #{tpu_custom_call.1} parent=5 // pred_fallthru
        _
      %p216 = scmp.lt.s32.totalorder %s23, 2
      // Predicated region
      $region25: #{tpu_custom_call.1} parent=5 // pred_check
        %p217 = pneg %p216
      $region26: #{tpu_custom_call.1} parent=5 // pred_check_branch
        %219 = sbr.rel (%p217) target = $region28
      $region27: #{tpu_custom_call.1} parent=5 // pred_region
        // Predicated region
        $region29: #{tpu_custom_call.1} parent=27 // pred_check
          %p220 = pneg %p43
        $region30: #{tpu_custom_call.1} parent=27 // pred_check_branch
          %222 = sbr.rel (%p220) target = $region32
        $region31: #{tpu_custom_call.1} parent=27 // pred_region
          %s223 = sand.u32 %s33, 1
          %s224 = scalar_lea.sflag [#allocation3], %s223
          %s225 = sand.u32 %s33, 1
          %s226 = smul.addr %s225, 8
          %s227 = scalar_lea.vmem [#allocation2], %s226
          %s229 = ssub.s32 128, 128
          %230 = vsyncadd %s224, %s229
          %s231 = smul.addr %s23, 128
          %s232 = scalar_lea.hbm %s0, %s231
          %s234 = sshll.u32 %s227, 4
          %s235 = int_to_ptr.vmem [resolvable:$true] %s234
          %237 = dma.hbm_to_vmem [thread:$0]  %s232, 128, %s235, %s224
        $region32: #{tpu_custom_call.1} parent=27 // pred_fallthru
          _
      $region28: #{tpu_custom_call.1} parent=5 // pred_fallthru
        _
      %p238 = scmp.le.s32.totalorder 1, %s23
      %p239 = scmp.lt.s32.totalorder %s23, 3
      %p240 = pnand %p238, %p239
      %p241 = pneg %p240
      // Predicated region
      $region33: #{tpu_custom_call.1} parent=5 // pred_check
        _
      $region34: #{tpu_custom_call.1} parent=5 // pred_check_branch
        %243 = sbr.rel (%p240) target = $region36
      $region35: #{tpu_custom_call.1} parent=5 // pred_region
        %s244 = ssub.s32 %s23, 1
        %s245 = sand.u32 %s36, 1
        %s246 = scalar_lea.sflag [#allocation3], %s245
        %s247 = sand.u32 %s36, 1
        %s248 = smul.addr %s247, 8
        %s249 = scalar_lea.vmem [#allocation2], %s248
        // Predicated region
        $region37: #{tpu_custom_call.1} parent=35 // pred_check
          %p250 = pneg %p49
        $region38: #{tpu_custom_call.1} parent=35 // pred_check_branch
          %252 = sbr.rel (%p250) target = $region40
        $region39: #{tpu_custom_call.1} parent=35 // pred_region
          %253 = dma.done %s246, 128
        $region40: #{tpu_custom_call.1} parent=35 // pred_fallthru
          _
        // Predicated region
        $region41: #{tpu_custom_call.1} parent=35 // pred_check
          %p254 = pneg %p70
        $region42: #{tpu_custom_call.1} parent=35 // pred_check_branch
          %256 = sbr.rel (%p254) target = $region44
        $region43: #{tpu_custom_call.1} parent=35 // pred_region
          %257 = dma.done [#allocation6], 512
        $region44: #{tpu_custom_call.1} parent=35 // pred_fallthru
          _
        // Predicated region
        $region45: #{tpu_custom_call.1} parent=35 // pred_check
          %p258 = pneg %p91
        $region46: #{tpu_custom_call.1} parent=35 // pred_check_branch
          %260 = sbr.rel (%p258) target = $region48
        $region47: #{tpu_custom_call.1} parent=35 // pred_region
          %261 = dma.done [#allocation6], 16
        $region48: #{tpu_custom_call.1} parent=35 // pred_fallthru
          _
        // Predicated region
        $region49: #{tpu_custom_call.1} parent=35 // pred_check
          %p262 = pneg %p112
        $region50: #{tpu_custom_call.1} parent=35 // pred_check_branch
          %264 = sbr.rel (%p262) target = $region52
        $region51: #{tpu_custom_call.1} parent=35 // pred_region
          %265 = dma.done [#allocation9], 1024
        $region52: #{tpu_custom_call.1} parent=35 // pred_fallthru
          _
        %s266 = sand.u32 %s36, 1
        %s267 = scalar_lea.sflag [#allocation3], %s266
        %s268 = sand.u32 %s36, 1
        %s269 = smul.addr %s268, 8
        %s270 = scalar_lea.vmem [#allocation2], %s269
        %p271 = pneg %p49
        %p272 = pneg %p46
        %p273 = pneg %p70
        %p274 = pneg %p67
        %p275 = pneg %p91
        %p276 = pneg %p88
        %p277 = pneg %p112
        %p278 = pneg %p109
        %p279 = pneg %p138
        %p280 = pneg %p135
        %s281 = sand.u32 %s125, 1
        %s282 = scalar_lea.sflag [#allocation4], %s281
        %s283 = sand.u32 %s125, 1
        %s284 = smul.addr %s283, 8
        %s285 = scalar_lea.vmem [#allocation10], %s284
        %p286 = pneg %p164
        %p287 = pneg %p161
        %s288 = sand.u32 %s151, 1
        %s289 = scalar_lea.sflag [#allocation12], %s288
        %s290 = sand.u32 %s151, 1
        %s291 = smul.addr %s290, 8
        %s292 = scalar_lea.vmem [#allocation11], %s291
        %v293 = vld [vmem:[%s249] sm:$0xff]
        %v294 = vld [vmem:[#allocation5] sm:$0xff]
        %v295 = vld [vmem:[#allocation5 + $0x8] sm:$0xff]
        %v296 = vld [vmem:[#allocation5 + $0x10] sm:$0xff]
        %v297 = vld [vmem:[#allocation5 + $0x18] sm:$0xff]
        %v298 = vld [vmem:[#allocation7] sm:$0x1]
        %v300 = vlaneseq
        %v301 = vshrl.u32 %v300, 7
        %v302 = vsub.s32 0, %v301
        %v303 = vrot.slane %v298, %v302
        %vm305 = vcmask 261120
        %v307 = vsel %vm305, %v293, 0
        %309 = vmatprep.subr.mxu0 0.0
        %310 = vmatpush1.msra.mxu0 %v294
        %311 = vmatprep.subr.mxu0 0.0
        %312 = vmatpush1.msra.mxu0 %v295
        %313 = vmatprep.subr.mxu0 0.0
        %314 = vmatpush1.msra.mxu0 %v296
        %315 = vmatprep.subr.mxu0 0.0
        %316 = vmatpush1.msra.mxu0 %v297
        %317 = vmatprep.subr.mxu0 0.0
        %318 = vmatpush1.msra.mxu0 0.0
        %319 = vmatprep.subr.mxu0 0.0
        %320 = vmatpush1.msra.mxu0 0.0
        %321 = vmatprep.subr.mxu0 0.0
        %322 = vmatpush1.msra.mxu0 0.0
        %323 = vmatprep.subr.mxu0 0.0
        %324 = vmatpush1.msra.mxu0 0.0
        %325 = vmatprep.subr.mxu0 0.0
        %326 = vmatpush1.msra.mxu0 0.0
        %327 = vmatprep.subr.mxu0 0.0
        %328 = vmatpush1.msra.mxu0 0.0
        %329 = vmatprep.subr.mxu0 0.0
        %330 = vmatpush1.msra.mxu0 0.0
        %331 = vmatprep.subr.mxu0 0.0
        %332 = vmatpush1.msra.mxu0 0.0
        %333 = vmatprep.subr.mxu0 0.0
        %334 = vmatpush1.msra.mxu0 0.0
        %335 = vmatprep.subr.mxu0 0.0
        %336 = vmatpush1.msra.mxu0 0.0
        %337 = vmatprep.subr.mxu0 0.0
        %338 = vmatpush1.msra.mxu0 0.0
        %339 = vmatprep.subr.mxu0 0.0
        %340 = vmatpush1.msra.mxu0 0.0
        %341 = vmatprep.subr.mxu0 0.0
        %342 = vmatpush1.msra.mxu0 0.0
        %343 = vmatprep.subr.mxu0 0.0
        %344 = vmatpush1.msra.mxu0 0.0
        %345 = vmatprep.subr.mxu0 0.0
        %346 = vmatpush1.msra.mxu0 0.0
        %347 = vmatprep.subr.mxu0 0.0
        %348 = vmatpush1.msra.mxu0 0.0
        %349 = vmatprep.subr.mxu0 0.0
        %350 = vmatpush1.msra.mxu0 0.0
        %351 = vmatprep.subr.mxu0 0.0
        %352 = vmatpush1.msra.mxu0 0.0
        %353 = vmatprep.subr.mxu0 0.0
        %354 = vmatpush1.msra.mxu0 0.0
        %355 = vmatprep.subr.mxu0 0.0
        %356 = vmatpush1.msra.mxu0 0.0
        %357 = vmatprep.subr.mxu0 0.0
        %358 = vmatpush1.msra.mxu0 0.0
        %359 = vmatprep.subr.mxu0 0.0
        %360 = vmatpush1.msra.mxu0 0.0
        %361 = vmatprep.subr.mxu0 0.0
        %362 = vmatpush1.msra.mxu0 0.0
        %363 = vmatprep.subr.mxu0 0.0
        %364 = vmatpush1.msra.mxu0 0.0
        %365 = vmatprep.subr.mxu0 0.0
        %366 = vmatpush1.msra.mxu0 0.0
        %367 = vmatprep.subr.mxu0 0.0
        %368 = vmatpush1.msra.mxu0 0.0
        %369 = vmatprep.subr.mxu0 0.0
        %370 = vmatpush1.msra.mxu0 0.0
        %371 = vmatprep.subr.mxu0 0.0
        %372 = vmatpush1.msra.mxu0 0.0
        %373 = vmatprep.mubr.f32.mxu0 0.0
        %374 = vmatmul.mubr.f32.gmra.mrb[0].mxu0 %v307
        %v375 = vpop.f32.mrb[0].mxu0
        %v376 = vadd.f32 %v303, %v375
        %v377 = vpop.f32.mrb[0].mxu0
        %378 = vdwg.mxu0
        %vm379 = vcmp.ge.f32.partialorder %v376, 0.0
        %v380 = vmul.f32 %v376, 0.01
        %v381 = vsel %vm379, %v376, %v380
        %v382 = vld [vmem:[#allocation8] sm:$0xff]
        %v383 = vld [vmem:[#allocation8 + $0x8] sm:$0xff]
        %v384 = vld [vmem:[#allocation8 + $0x10] sm:$0xff]
        %v385 = vld [vmem:[#allocation8 + $0x18] sm:$0xff]
        %v386 = vld [vmem:[#allocation8 + $0x20] sm:$0xff]
        %v387 = vld [vmem:[#allocation8 + $0x28] sm:$0xff]
        %v388 = vld [vmem:[#allocation8 + $0x30] sm:$0xff]
        %v389 = vld [vmem:[#allocation8 + $0x38] sm:$0xff]
        %vm390 = vcmask 523264
        %v392 = vsel %vm390, %v381, 0
        %394 = vmatprep.subr.mxu0 0.0
        %395 = vmatpush1.msra.mxu0 %v382
        %396 = vmatprep.subr.mxu0 0.0
        %397 = vmatpush1.msra.mxu0 %v383
        %398 = vmatprep.subr.mxu0 0.0
        %399 = vmatpush1.msra.mxu0 %v384
        %400 = vmatprep.subr.mxu0 0.0
        %401 = vmatpush1.msra.mxu0 %v385
        %402 = vmatprep.subr.mxu0 0.0
        %403 = vmatpush1.msra.mxu0 %v386
        %404 = vmatprep.subr.mxu0 0.0
        %405 = vmatpush1.msra.mxu0 %v387
        %406 = vmatprep.subr.mxu0 0.0
        %407 = vmatpush1.msra.mxu0 %v388
        %408 = vmatprep.subr.mxu0 0.0
        %409 = vmatpush1.msra.mxu0 %v389
        %410 = vmatprep.subr.mxu0 0.0
        %411 = vmatpush1.msra.mxu0 0.0
        %412 = vmatprep.subr.mxu0 0.0
        %413 = vmatpush1.msra.mxu0 0.0
        %414 = vmatprep.subr.mxu0 0.0
        %415 = vmatpush1.msra.mxu0 0.0
        %416 = vmatprep.subr.mxu0 0.0
        %417 = vmatpush1.msra.mxu0 0.0
        %418 = vmatprep.subr.mxu0 0.0
        %419 = vmatpush1.msra.mxu0 0.0
        %420 = vmatprep.subr.mxu0 0.0
        %421 = vmatpush1.msra.mxu0 0.0
        %422 = vmatprep.subr.mxu0 0.0
        %423 = vmatpush1.msra.mxu0 0.0
        %424 = vmatprep.subr.mxu0 0.0
        %425 = vmatpush1.msra.mxu0 0.0
        %426 = vmatprep.subr.mxu0 0.0
        %427 = vmatpush1.msra.mxu0 0.0
        %428 = vmatprep.subr.mxu0 0.0
        %429 = vmatpush1.msra.mxu0 0.0
        %430 = vmatprep.subr.mxu0 0.0
        %431 = vmatpush1.msra.mxu0 0.0
        %432 = vmatprep.subr.mxu0 0.0
        %433 = vmatpush1.msra.mxu0 0.0
        %434 = vmatprep.subr.mxu0 0.0
        %435 = vmatpush1.msra.mxu0 0.0
        %436 = vmatprep.subr.mxu0 0.0
        %437 = vmatpush1.msra.mxu0 0.0
        %438 = vmatprep.subr.mxu0 0.0
        %439 = vmatpush1.msra.mxu0 0.0
        %440 = vmatprep.subr.mxu0 0.0
        %441 = vmatpush1.msra.mxu0 0.0
        %442 = vmatprep.subr.mxu0 0.0
        %443 = vmatpush1.msra.mxu0 0.0
        %444 = vmatprep.subr.mxu0 0.0
        %445 = vmatpush1.msra.mxu0 0.0
        %446 = vmatprep.subr.mxu0 0.0
        %447 = vmatpush1.msra.mxu0 0.0
        %448 = vmatprep.subr.mxu0 0.0
        %449 = vmatpush1.msra.mxu0 0.0
        %450 = vmatprep.subr.mxu0 0.0
        %451 = vmatpush1.msra.mxu0 0.0
        %452 = vmatprep.subr.mxu0 0.0
        %453 = vmatpush1.msra.mxu0 0.0
        %454 = vmatprep.subr.mxu0 0.0
        %455 = vmatpush1.msra.mxu0 0.0
        %456 = vmatprep.subr.mxu0 0.0
        %457 = vmatpush1.msra.mxu0 0.0
        %458 = vmatprep.mubr.f32.mxu0 0.0
        %459 = vmatmul.mubr.f32.gmra.mrb[0].mxu0 %v392
        %v460 = vpop.f32.mrb[0].mxu0
        %v461 = vadd.f32 0.0, %v460
        %v462 = vpop.f32.mrb[0].mxu0
        %463 = vdwg.mxu0
        %464 = vst.msk [vmem:[%s285] sm:$0xff] %vm390, %v381
        %465 = vst.msk [vmem:[%s292] sm:$0xff] %vm390, %v461
        %s466 = sand.u32 %s125, 1
        %s467 = scalar_lea.sflag [#allocation4], %s466
        %s468 = sand.u32 %s125, 1
        %s469 = smul.addr %s468, 8
        %s470 = scalar_lea.vmem [#allocation10], %s469
        %s471 = sand.u32 %s151, 1
        %s472 = scalar_lea.sflag [#allocation12], %s471
        %s473 = sand.u32 %s151, 1
        %s474 = smul.addr %s473, 8
        %s475 = scalar_lea.vmem [#allocation11], %s474
        // Predicated region
        $region53: #{tpu_custom_call.1} parent=35 // pred_check
          %p476 = pneg %p135
        $region54: #{tpu_custom_call.1} parent=35 // pred_check_branch
          %478 = sbr.rel (%p476) target = $region56
        $region55: #{tpu_custom_call.1} parent=35 // pred_region
          %s480 = ssub.s32 128, 128
          %481 = vsyncadd %s467, %s480
          %s482 = smul.addr %s28, 128
          %s483 = scalar_lea.hbm %s4, %s482
          %s485 = sshll.u32 %s470, 4
          %s486 = int_to_ptr.vmem [resolvable:$true] %s485
          %488 = dma.vmem_to_hbm [thread:$0]  %s486, 128, %s483, %s467
        $region56: #{tpu_custom_call.1} parent=35 // pred_fallthru
          _
        // Predicated region
        $region57: #{tpu_custom_call.1} parent=35 // pred_check
          %p489 = pneg %p161
        $region58: #{tpu_custom_call.1} parent=35 // pred_check_branch
          %491 = sbr.rel (%p489) target = $region60
        $region59: #{tpu_custom_call.1} parent=35 // pred_region
          %s493 = ssub.s32 128, 128
          %494 = vsyncadd %s472, %s493
          %s495 = smul.addr %s28, 128
          %s496 = scalar_lea.hbm %s5, %s495
          %s498 = sshll.u32 %s475, 4
          %s499 = int_to_ptr.vmem [resolvable:$true] %s498
          %501 = dma.vmem_to_hbm [thread:$0]  %s499, 128, %s496, %s472
        $region60: #{tpu_custom_call.1} parent=35 // pred_fallthru
          _
      $region36: #{tpu_custom_call.1} parent=5 // pred_fallthru
        _
      %p502 = scmp.le.s32.totalorder 2, %s23
      // Predicated region
      $region61: #{tpu_custom_call.1} parent=5 // pred_check
        %p503 = pneg %p502
      $region62: #{tpu_custom_call.1} parent=5 // pred_check_branch
        %505 = sbr.rel (%p503) target = $region64
      $region63: #{tpu_custom_call.1} parent=5 // pred_region
        %s506 = ssub.s32 %s23, 2
        // Predicated region
        $region65: #{tpu_custom_call.1} parent=63 // pred_check
          %p507 = pneg %p141
        $region66: #{tpu_custom_call.1} parent=63 // pred_check_branch
          %509 = sbr.rel (%p507) target = $region68
        $region67: #{tpu_custom_call.1} parent=63 // pred_region
          %s510 = sand.u32 %s126, 1
          %s511 = scalar_lea.sflag [#allocation4], %s510
          %s512 = sand.u32 %s126, 1
          %s513 = smul.addr %s512, 8
          %s514 = scalar_lea.vmem [#allocation10], %s513
          %515 = dma.done %s511, 128
        $region68: #{tpu_custom_call.1} parent=63 // pred_fallthru
          _
        // Predicated region
        $region69: #{tpu_custom_call.1} parent=63 // pred_check
          %p516 = pneg %p167
        $region70: #{tpu_custom_call.1} parent=63 // pred_check_branch
          %518 = sbr.rel (%p516) target = $region72
        $region71: #{tpu_custom_call.1} parent=63 // pred_region
          %s519 = sand.u32 %s152, 1
          %s520 = scalar_lea.sflag [#allocation12], %s519
          %s521 = sand.u32 %s152, 1
          %s522 = smul.addr %s521, 8
          %s523 = scalar_lea.vmem [#allocation11], %s522
          %524 = dma.done %s520, 128
        $region72: #{tpu_custom_call.1} parent=63 // pred_fallthru
          _
      $region64: #{tpu_custom_call.1} parent=5 // pred_fallthru
        _
    $region6: #{tpu_custom_call.1} parent=1 // loop_footer
      %s27 = sadd.s32 1, %s23
    $region7: #{tpu_custom_call.1} parent=1 // loop_footer_branch
      %22 = sbr.rel target = $region3
    $region8: #{tpu_custom_call.1} parent=1 // loop_exit
      _
    %525 = vsyncpa [#allocation3], 1
    %s526 = scalar_lea.sflag [#allocation3], 1
    %527 = vsyncpa %s526, 1
    %528 = vsyncpa [#allocation6], 1
    %529 = vsyncpa [#allocation9], 1
    %530 = vsyncpa [#allocation4], 1
    %s531 = scalar_lea.sflag [#allocation4], 1
    %532 = vsyncpa %s531, 1
    %533 = vsyncpa [#allocation12], 1
    %s534 = scalar_lea.sflag [#allocation12], 1
    %535 = vsyncpa %s534, 1

</llo_original>
